<compile_context>
chip_gen: v6e
topology: v6e:2x2x1
jax: 0.10.0
libtpu: 0.0.40
codegen_flags: <defaults>
</compile_context>

<pallas_src>
import functools

import jax
import jax.numpy as jnp
from jax.experimental import pallas as pl
from jax.experimental.pallas import tpu as pltpu


def _round_up(n, m):
    return ((n + m - 1) // m) * m


# ---------------------------------------------------------------------------
# Kernel: 4 matmuls (MXU, f32 accumulation) + bias adds / LeakyReLU / ReLU (VPU)
# + exp / sigmoid (EUP) + reparameterization, all on one [TB, ...] batch tile.
# Weights and biases are grid-resident (constant index_map, single-buffered).
# ---------------------------------------------------------------------------
def _vae_kernel(x_ref, eps_ref,
                w1_ref, b1_ref, w2_ref, b2_ref, w3_ref, b3_ref, w4_ref, b4_ref,
                recon_ref, mu_ref, logvar_ref):
    latent = eps_ref.shape[-1]
    mdt = w1_ref.dtype                      # matmul-input dtype (f32 or bf16)

    # ----- encoder: Linear -> LeakyReLU(0.2) -> Linear -----
    h1 = jnp.dot(x_ref[...].astype(mdt), w1_ref[...],
                 preferred_element_type=jnp.float32) + b1_ref[...]
    h1 = jnp.where(h1 > 0, h1, 0.2 * h1)                    # LeakyReLU(0.2), f32 on VPU
    mom = jnp.dot(h1.astype(mdt), w2_ref[...],
                  preferred_element_type=jnp.float32) + b2_ref[...]   # [TB, 2*latent]

    # ----- torch.chunk(h, 2, dim=1) -----
    mu = mom[:, :latent]
    logvar = mom[:, latent:]
    mu_ref[...] = mu.astype(mu_ref.dtype)
    logvar_ref[...] = logvar.astype(logvar_ref.dtype)

    # ----- reparameterize (f32): z = mu + exp(0.5 * logvar) * eps -----
    z = mu + jnp.exp(0.5 * logvar) * eps_ref[...].astype(jnp.float32)

    # ----- decoder: Linear -> ReLU -> Linear -> Sigmoid -----
    d1 = jnp.dot(z.astype(mdt), w3_ref[...],
                 preferred_element_type=jnp.float32) + b3_ref[...]
    d1 = jnp.maximum(d1, 0.0)
    logits = jnp.dot(d1.astype(mdt), w4_ref[...],
                     preferred_element_type=jnp.float32) + b4_ref[...]
    recon_ref[...] = jax.nn.sigmoid(logits).astype(recon_ref.dtype)


# ---------------------------------------------------------------------------
# One-time parameter packing (outside the per-step path):
#  - weights cast to the matmul-input dtype here (no per-call astype under jit);
#  - the hidden dim is zero-padded to a 128-lane multiple (free: weights are
#    resident; padded activation columns stay exactly 0 through LeakyReLU/ReLU);
#  - image and latent dims keep their natural sizes so x / eps / outputs need
#    NO per-call padding or slicing;
#  - biases stay f32 (added after the f32-accumulated matmul).
# ---------------------------------------------------------------------------
def pack_params(params, *, compute_dtype=jnp.bfloat16):
    ew1, eb1, ew2, eb2, dw1, db1, dw2, db2 = params
    image_size, h_dim = ew1.shape
    two_latent = ew2.shape[1]
    latent = two_latent // 2
    HP = _round_up(h_dim, 128)
    mdt = compute_dtype

    w1 = jnp.zeros((image_size, HP), mdt).at[:, :h_dim].set(ew1.astype(mdt))
    b1 = jnp.zeros((1, HP), jnp.float32).at[:, :h_dim].set(eb1.reshape(1, -1))
    w2 = jnp.zeros((HP, two_latent), mdt).at[:h_dim, :].set(ew2.astype(mdt))
    b2 = eb2.reshape(1, -1).astype(jnp.float32)
    w3 = jnp.zeros((latent, HP), mdt).at[:, :h_dim].set(dw1.astype(mdt))
    b3 = jnp.zeros((1, HP), jnp.float32).at[:, :h_dim].set(db1.reshape(1, -1))
    w4 = jnp.zeros((HP, image_size), mdt).at[:h_dim, :].set(dw2.astype(mdt))
    b4 = db2.reshape(1, -1).astype(jnp.float32)

    dims = dict(image_size=image_size, h_dim=h_dim, latent=latent, HP=HP)
    return (w1, b1, w2, b2, w3, b3, w4, b4), dims


def _pick_batch_tile(B):
    # Big tiles amortize the ~0.35us per-grid-step overhead (measured: 128-row
    # tiles reach ~29% of HBM roofline vs ~85% at 512), but keep >= 2 grid steps
    # when B allows so the "parallel" axis can use v7x's second TensorCore.
    return min(512, max(8, _round_up(pl.cdiv(B, 2), 8)))


# ---------------------------------------------------------------------------
# Wrapper
# ---------------------------------------------------------------------------
def vae_forward(x, eps, packed, *, dims, batch_tile=None, recon_dtype=None):
    """Full VAE forward in one fused Pallas kernel.

    x:   [B, image_size]   (any float dtype; cast to the matmul dtype in-kernel)
    eps: [B, latent]       external torch.randn-style noise
    Returns (recon [B, image_size], mu [B, latent], logvar [B, latent]).
    """
    w1, b1, w2, b2, w3, b3, w4, b4 = packed
    B, image_size = x.shape
    latent, HP, h_dim = dims["latent"], dims["HP"], dims["h_dim"]
    assert image_size == dims["image_size"]
    assert eps.shape == (B, latent)

    mdt = w1.dtype
    if recon_dtype is None:
        recon_dtype = mdt          # bf16 recon halves the largest output DMA
    TB = batch_tile if batch_tile is not None else _pick_batch_tile(B)
    grid = (pl.cdiv(B, TB),)

    # Resident parameters: constant index_map + single buffering (fetched once).
    def _resident(shape):
        return pl.BlockSpec(shape, lambda i: (0, 0), pipeline_mode=pl.Buffered(1))

    # Explicit VMEM budget: single-buffered params + double-buffered activation
    # tiles + f32 intermediates, clamped under v7x's 64 MiB physical VMEM.
    w_isz = jnp.dtype(mdt).itemsize
    wb_bytes = (w1.size + w2.size + w3.size + w4.size) * w_isz \
        + (b1.size + b2.size + b3.size + b4.size) * 4
    act_in_bytes = 2 * TB * (image_size * x.dtype.itemsize + latent * eps.dtype.itemsize)
    out_bytes = 2 * TB * (image_size * jnp.dtype(recon_dtype).itemsize + 2 * latent * 4)
    interm_bytes = TB * (2 * HP + image_size + 4 * latent) * 4
    vmem_limit = int(min(max(wb_bytes + act_in_bytes + out_bytes + 2 * interm_bytes,
                             8 << 20), 56 << 20))

    flops = 2 * B * (image_size * h_dim + h_dim * 2 * latent
                     + latent * h_dim + h_dim * image_size)
    cost = pl.CostEstimate(
        flops=int(flops),
        transcendentals=int(B * (latent + image_size)),
        bytes_accessed=int(B * (image_size * x.dtype.itemsize + latent * 4)
                           + wb_bytes
                           + B * (image_size * jnp.dtype(recon_dtype).itemsize
                                  + 2 * latent * 4)),
    )

    recon, mu, logvar = pl.pallas_call(
        _vae_kernel,
        out_shape=(jax.ShapeDtypeStruct((B, image_size), recon_dtype),
                   jax.ShapeDtypeStruct((B, latent), jnp.float32),
                   jax.ShapeDtypeStruct((B, latent), jnp.float32)),
        grid_spec=pltpu.PrefetchScalarGridSpec(
            num_scalar_prefetch=0,
            grid=grid,
            in_specs=[
                pl.BlockSpec((TB, image_size), lambda i: (i, 0)),   # x tile
                pl.BlockSpec((TB, latent), lambda i: (i, 0)),       # eps tile
                _resident((image_size, HP)),                        # encoder W1
                _resident((1, HP)),                                 # encoder b1
                _resident((HP, 2 * latent)),                        # encoder W2
                _resident((1, 2 * latent)),                         # encoder b2
                _resident((latent, HP)),                            # decoder W1
                _resident((1, HP)),                                 # decoder b1
                _resident((HP, image_size)),                        # decoder W2
                _resident((1, image_size)),                         # decoder b2
            ],
            out_specs=(
                pl.BlockSpec((TB, image_size), lambda i: (i, 0)),   # recon
                pl.BlockSpec((TB, latent), lambda i: (i, 0)),       # mu
                pl.BlockSpec((TB, latent), lambda i: (i, 0)),       # logvar
            ),
        ),
        compiler_params=pltpu.CompilerParams(
            dimension_semantics=("parallel",),       # megacore / v7x 2-TC batch split
            vmem_limit_bytes=vmem_limit,
        ),
        cost_estimate=cost,
    )(x, eps, w1, b1, w2, b2, w3, b3, w4, b4)
    return recon, mu, logvar


# ---------------------------------------------------------------------------
# Deterministic parameter construction (shapes follow the module's __init__)
# ---------------------------------------------------------------------------
def make_params(key, image_size, h_dim, z_dim):
    """z_dim here is the *encoder output* width (= 2 * latent)."""
    ks = jax.random.split(key, 8)
    scale = 0.1
    # Weights stored as [in, out] (transposed vs. torch.nn.Linear.weight).
    ew1 = scale * jax.random.normal(ks[0], (image_size, h_dim), jnp.float32)
    eb1 = scale * jax.random.normal(ks[1], (1, h_dim), jnp.float32)
    ew2 = scale * jax.random.normal(ks[2], (h_dim, z_dim), jnp.float32)
    eb2 = scale * jax.random.normal(ks[3], (1, z_dim), jnp.float32)
    latent = z_dim // 2
    dw1 = scale * jax.random.normal(ks[4], (latent, h_dim), jnp.float32)
    db1 = scale * jax.random.normal(ks[5], (1, h_dim), jnp.float32)
    dw2 = scale * jax.random.normal(ks[6], (h_dim, image_size), jnp.float32)
    db2 = scale * jax.random.normal(ks[7], (1, image_size), jnp.float32)
    return (ew1, eb1, ew2, eb2, dw1, db1, dw2, db2)


# Pure-JAX reference for sanity checking.
def vae_ref(x, params, eps):
    ew1, eb1, ew2, eb2, dw1, db1, dw2, db2 = params
    h1 = x @ ew1 + eb1
    h1 = jnp.where(h1 > 0, h1, 0.2 * h1)
    h = h1 @ ew2 + eb2
    half = h.shape[1] // 2
    mu, logvar = h[:, :half], h[:, half:]
    z = mu + jnp.exp(0.5 * logvar) * eps
    d1 = jnp.maximum(z @ dw1 + db1, 0.0)
    recon = jax.nn.sigmoid(d1 @ dw2 + db2)
    return recon, mu, logvar


if __name__ == "__main__":
    # Small, consistent shapes: batch=8, image_size=64, h_dim=32,
    # encoder-output z_dim=8 -> latent (mu/logvar) width 4.
    B, IMAGE, HDIM, ZDIM = 8, 64, 32, 8
    LATENT = ZDIM // 2

    key = jax.random.PRNGKey(0)
    k_x, k_p, k_e = jax.random.split(key, 3)

    x = jax.random.normal(k_x, (B, IMAGE), jnp.float32)
    params = make_params(k_p, IMAGE, HDIM, ZDIM)
    eps = jax.random.normal(k_e, (B, LATENT), jnp.float32)   # torch.randn(*mu.size())

    r_ref, m_ref, lv_ref = vae_ref(x, params, eps)

    # f32 matmul-input path: tight tolerance check.
    packed_f32, dims32 = pack_params(params, compute_dtype=jnp.float32)
    fwd_f32 = jax.jit(functools.partial(vae_forward, dims=dims32))
    recon, mu, logvar = fwd_f32(x, eps, packed_f32)
    jax.block_until_ready((recon, mu, logvar))
    assert recon.shape == (B, IMAGE) and mu.shape == (B, LATENT) and logvar.shape == (B, LATENT)
    assert jnp.allclose(recon, r_ref, atol=1e-4)
    assert jnp.allclose(mu, m_ref, atol=1e-4)
    assert jnp.allclose(logvar, lv_ref, atol=1e-4)

    # bf16 matmul-input path (the default for all TPU generations, v5e included):
    # f32 MXU accumulation, f32 elementwise/EUP math, bf16 recon output.
    packed_bf16, dims16 = pack_params(params, compute_dtype=jnp.bfloat16)
    fwd_bf16 = jax.jit(functools.partial(vae_forward, dims=dims16))
    recon_b, mu_b, lv_b = fwd_bf16(x, eps, packed_bf16)
    jax.block_until_ready((recon_b, mu_b, lv_b))
    assert jnp.allclose(recon_b.astype(jnp.float32), r_ref, atol=5e-2)
    assert jnp.allclose(mu_b, m_ref, atol=5e-2)
    assert jnp.allclose(lv_b, lv_ref, atol=5e-2)

    print("KERNEL_OK")
</pallas_src>

<mosaic_0001>
module attributes {stable_mosaic.version = 11 : i64} {
  func.func @_vae_kernel(%arg0: i32, %arg1: memref<8x64xf32, #tpu.memory_space<vmem>>, %arg2: memref<8x4xf32, #tpu.memory_space<vmem>>, %arg3: memref<64x128xf32, #tpu.memory_space<vmem>>, %arg4: memref<1x128xf32, #tpu.memory_space<vmem>>, %arg5: memref<128x8xf32, #tpu.memory_space<vmem>>, %arg6: memref<1x8xf32, #tpu.memory_space<vmem>>, %arg7: memref<4x128xf32, #tpu.memory_space<vmem>>, %arg8: memref<1x128xf32, #tpu.memory_space<vmem>>, %arg9: memref<128x64xf32, #tpu.memory_space<vmem>>, %arg10: memref<1x64xf32, #tpu.memory_space<vmem>>, %arg11: memref<8x64xf32, #tpu.memory_space<vmem>>, %arg12: memref<8x4xf32, #tpu.memory_space<vmem>>, %arg13: memref<8x4xf32, #tpu.memory_space<vmem>>) attributes {dimension_semantics = [#tpu.dimension_semantics<parallel>], iteration_bounds = array<i64: 1>, scalar_prefetch = 0 : i64, scratch_operands = 0 : i64, tpu.core_type = #tpu.core_type<tc>, window_params = [{transform_indices = @transform_0, window_bounds = array<i64: 8, 64>}, {transform_indices = @transform_1, window_bounds = array<i64: 8, 4>}, {pipeline_mode = #tpu.pipeline_mode<synchronous>, transform_indices = @transform_2, window_bounds = array<i64: 64, 128>}, {pipeline_mode = #tpu.pipeline_mode<synchronous>, transform_indices = @transform_3, window_bounds = array<i64: 1, 128>}, {pipeline_mode = #tpu.pipeline_mode<synchronous>, transform_indices = @transform_4, window_bounds = array<i64: 128, 8>}, {pipeline_mode = #tpu.pipeline_mode<synchronous>, transform_indices = @transform_5, window_bounds = array<i64: 1, 8>}, {pipeline_mode = #tpu.pipeline_mode<synchronous>, transform_indices = @transform_6, window_bounds = array<i64: 4, 128>}, {pipeline_mode = #tpu.pipeline_mode<synchronous>, transform_indices = @transform_7, window_bounds = array<i64: 1, 128>}, {pipeline_mode = #tpu.pipeline_mode<synchronous>, transform_indices = @transform_8, window_bounds = array<i64: 128, 64>}, {pipeline_mode = #tpu.pipeline_mode<synchronous>, transform_indices = @transform_9, window_bounds = array<i64: 1, 64>}, {transform_indices = @transform_10, window_bounds = array<i64: 8, 64>}, {transform_indices = @transform_11, window_bounds = array<i64: 8, 4>}, {transform_indices = @transform_12, window_bounds = array<i64: 8, 4>}]} {
    %c0 = arith.constant 0 : index
    %c0_0 = arith.constant 0 : index
    %0 = vector.load %arg1[%c0, %c0_0] : memref<8x64xf32, #tpu.memory_space<vmem>>, vector<8x64xf32>
    %c0_1 = arith.constant 0 : index
    %c0_2 = arith.constant 0 : index
    %1 = vector.load %arg3[%c0_1, %c0_2] : memref<64x128xf32, #tpu.memory_space<vmem>>, vector<64x128xf32>
    %cst = arith.constant dense<0.000000e+00> : vector<8x128xf32>
    %2 = tpu.matmul %0, %1, %cst {dimension_numbers = #tpu.dot_dimension_numbers<[1], [0], [0], [1], [0, 0, 1, 1], [], []>} : vector<8x64xf32>, vector<64x128xf32>, vector<8x128xf32> -> vector<8x128xf32>
    %c0_3 = arith.constant 0 : index
    %c0_4 = arith.constant 0 : index
    %3 = vector.load %arg4[%c0_3, %c0_4] : memref<1x128xf32, #tpu.memory_space<vmem>>, vector<1x128xf32>
    %4 = vector.broadcast %3 : vector<1x128xf32> to vector<8x128xf32>
    %5 = arith.addf %2, %4 : vector<8x128xf32>
    %cst_5 = arith.constant 0.000000e+00 : f32
    %6 = vector.broadcast %cst_5 : f32 to vector<8x128xf32>
    %7 = arith.cmpf ogt, %5, %6 : vector<8x128xf32>
    %cst_6 = arith.constant 2.000000e-01 : f32
    %8 = vector.broadcast %cst_6 : f32 to vector<8x128xf32>
    %9 = arith.mulf %8, %5 : vector<8x128xf32>
    %10 = arith.select %7, %5, %9 : vector<8x128xi1>, vector<8x128xf32>
    %c0_7 = arith.constant 0 : index
    %c0_8 = arith.constant 0 : index
    %11 = vector.load %arg5[%c0_7, %c0_8] : memref<128x8xf32, #tpu.memory_space<vmem>>, vector<128x8xf32>
    %cst_9 = arith.constant dense<0.000000e+00> : vector<8x8xf32>
    %12 = tpu.matmul %10, %11, %cst_9 {dimension_numbers = #tpu.dot_dimension_numbers<[1], [0], [0], [1], [0, 0, 1, 1], [], []>} : vector<8x128xf32>, vector<128x8xf32>, vector<8x8xf32> -> vector<8x8xf32>
    %c0_10 = arith.constant 0 : index
    %c0_11 = arith.constant 0 : index
    %13 = vector.load %arg6[%c0_10, %c0_11] : memref<1x8xf32, #tpu.memory_space<vmem>>, vector<1x8xf32>
    %14 = vector.broadcast %13 : vector<1x8xf32> to vector<8x8xf32>
    %15 = arith.addf %12, %14 : vector<8x8xf32>
    %16 = vector.extract_strided_slice %15 {offsets = [0, 0], sizes = [8, 4], strides = [1, 1]} : vector<8x8xf32> to vector<8x4xf32>
    %17 = vector.extract_strided_slice %15 {offsets = [0, 4], sizes = [8, 4], strides = [1, 1]} : vector<8x8xf32> to vector<8x4xf32>
    %c0_12 = arith.constant 0 : index
    %c0_13 = arith.constant 0 : index
    %18 = vector.load %arg12[%c0_12, %c0_13] : memref<8x4xf32, #tpu.memory_space<vmem>>, vector<8x4xf32>
    tpu.vector_store %arg12[%c0_12, %c0_13], %16 {strides = array<i32>} : memref<8x4xf32, #tpu.memory_space<vmem>>, vector<8x4xf32>,
    %c0_14 = arith.constant 0 : index
    %c0_15 = arith.constant 0 : index
    %19 = vector.load %arg13[%c0_14, %c0_15] : memref<8x4xf32, #tpu.memory_space<vmem>>, vector<8x4xf32>
    tpu.vector_store %arg13[%c0_14, %c0_15], %17 {strides = array<i32>} : memref<8x4xf32, #tpu.memory_space<vmem>>, vector<8x4xf32>,
    %cst_16 = arith.constant 5.000000e-01 : f32
    %20 = vector.broadcast %cst_16 : f32 to vector<8x4xf32>
    %21 = arith.mulf %20, %17 : vector<8x4xf32>
    %22 = math.exp %21 : vector<8x4xf32>
    %c0_17 = arith.constant 0 : index
    %c0_18 = arith.constant 0 : index
    %23 = vector.load %arg2[%c0_17, %c0_18] : memref<8x4xf32, #tpu.memory_space<vmem>>, vector<8x4xf32>
    %24 = arith.mulf %22, %23 : vector<8x4xf32>
    %25 = arith.addf %16, %24 : vector<8x4xf32>
    %c0_19 = arith.constant 0 : index
    %c0_20 = arith.constant 0 : index
    %26 = vector.load %arg7[%c0_19, %c0_20] : memref<4x128xf32, #tpu.memory_space<vmem>>, vector<4x128xf32>
    %cst_21 = arith.constant dense<0.000000e+00> : vector<8x128xf32>
    %27 = tpu.matmul %25, %26, %cst_21 {dimension_numbers = #tpu.dot_dimension_numbers<[1], [0], [0], [1], [0, 0, 1, 1], [], []>} : vector<8x4xf32>, vector<4x128xf32>, vector<8x128xf32> -> vector<8x128xf32>
    %c0_22 = arith.constant 0 : index
    %c0_23 = arith.constant 0 : index
    %28 = vector.load %arg8[%c0_22, %c0_23] : memref<1x128xf32, #tpu.memory_space<vmem>>, vector<1x128xf32>
    %29 = vector.broadcast %28 : vector<1x128xf32> to vector<8x128xf32>
    %30 = arith.addf %27, %29 : vector<8x128xf32>
    %cst_24 = arith.constant 0.000000e+00 : f32
    %31 = vector.broadcast %cst_24 : f32 to vector<8x128xf32>
    %32 = arith.maximumf %30, %31 : vector<8x128xf32>
    %c0_25 = arith.constant 0 : index
    %c0_26 = arith.constant 0 : index
    %33 = vector.load %arg9[%c0_25, %c0_26] : memref<128x64xf32, #tpu.memory_space<vmem>>, vector<128x64xf32>
    %cst_27 = arith.constant dense<0.000000e+00> : vector<8x64xf32>
    %34 = tpu.matmul %32, %33, %cst_27 {dimension_numbers = #tpu.dot_dimension_numbers<[1], [0], [0], [1], [0, 0, 1, 1], [], []>} : vector<8x128xf32>, vector<128x64xf32>, vector<8x64xf32> -> vector<8x64xf32>
    %c0_28 = arith.constant 0 : index
    %c0_29 = arith.constant 0 : index
    %35 = vector.load %arg10[%c0_28, %c0_29] : memref<1x64xf32, #tpu.memory_space<vmem>>, vector<1x64xf32>
    %36 = vector.broadcast %35 : vector<1x64xf32> to vector<8x64xf32>
    %37 = arith.addf %34, %36 : vector<8x64xf32>
    %38 = arith.negf %37 : vector<8x64xf32>
    %39 = math.exp %38 : vector<8x64xf32>
    %cst_30 = arith.constant 1.000000e+00 : f32
    %40 = vector.broadcast %cst_30 : f32 to vector<8x64xf32>
    %41 = arith.addf %40, %39 : vector<8x64xf32>
    %42 = arith.divf %40, %41 : vector<8x64xf32>
    %c0_31 = arith.constant 0 : index
    %c0_32 = arith.constant 0 : index
    %43 = vector.load %arg11[%c0_31, %c0_32] : memref<8x64xf32, #tpu.memory_space<vmem>>, vector<8x64xf32>
    tpu.vector_store %arg11[%c0_31, %c0_32], %42 {strides = array<i32>} : memref<8x64xf32, #tpu.memory_space<vmem>>, vector<8x64xf32>,
    return
  }
  func.func @transform_0(%arg0: i32) -> (i32, i32) {
    %c0_i32 = arith.constant 0 : i32
    %c0_i32_0 = arith.constant 0 : i32
    return %arg0, %c0_i32 : i32, i32
  }
  func.func @transform_1(%arg0: i32) -> (i32, i32) {
    %c0_i32 = arith.constant 0 : i32
    %c0_i32_0 = arith.constant 0 : i32
    return %arg0, %c0_i32 : i32, i32
  }
  func.func @transform_2(%arg0: i32) -> (i32, i32) {
    %c0_i32 = arith.constant 0 : i32
    %c0_i32_0 = arith.constant 0 : i32
    %c0_i32_1 = arith.constant 0 : i32
    return %c0_i32, %c0_i32_0 : i32, i32
  }
  func.func @transform_3(%arg0: i32) -> (i32, i32) {
    %c0_i32 = arith.constant 0 : i32
    %c0_i32_0 = arith.constant 0 : i32
    %c0_i32_1 = arith.constant 0 : i32
    return %c0_i32, %c0_i32_0 : i32, i32
  }
  func.func @transform_4(%arg0: i32) -> (i32, i32) {
    %c0_i32 = arith.constant 0 : i32
    %c0_i32_0 = arith.constant 0 : i32
    %c0_i32_1 = arith.constant 0 : i32
    return %c0_i32, %c0_i32_0 : i32, i32
  }
  func.func @transform_5(%arg0: i32) -> (i32, i32) {
    %c0_i32 = arith.constant 0 : i32
    %c0_i32_0 = arith.constant 0 : i32
    %c0_i32_1 = arith.constant 0 : i32
    return %c0_i32, %c0_i32_0 : i32, i32
  }
  func.func @transform_6(%arg0: i32) -> (i32, i32) {
    %c0_i32 = arith.constant 0 : i32
    %c0_i32_0 = arith.constant 0 : i32
    %c0_i32_1 = arith.constant 0 : i32
    return %c0_i32, %c0_i32_0 : i32, i32
  }
  func.func @transform_7(%arg0: i32) -> (i32, i32) {
    %c0_i32 = arith.constant 0 : i32
    %c0_i32_0 = arith.constant 0 : i32
    %c0_i32_1 = arith.constant 0 : i32
    return %c0_i32, %c0_i32_0 : i32, i32
  }
  func.func @transform_8(%arg0: i32) -> (i32, i32) {
    %c0_i32 = arith.constant 0 : i32
    %c0_i32_0 = arith.constant 0 : i32
    %c0_i32_1 = arith.constant 0 : i32
    return %c0_i32, %c0_i32_0 : i32, i32
  }
  func.func @transform_9(%arg0: i32) -> (i32, i32) {
    %c0_i32 = arith.constant 0 : i32
    %c0_i32_0 = arith.constant 0 : i32
    %c0_i32_1 = arith.constant 0 : i32
    return %c0_i32, %c0_i32_0 : i32, i32
  }
  func.func @transform_10(%arg0: i32) -> (i32, i32) {
    %c0_i32 = arith.constant 0 : i32
    %c0_i32_0 = arith.constant 0 : i32
    return %arg0, %c0_i32 : i32, i32
  }
  func.func @transform_11(%arg0: i32) -> (i32, i32) {
    %c0_i32 = arith.constant 0 : i32
    %c0_i32_0 = arith.constant 0 : i32
    return %arg0, %c0_i32 : i32, i32
  }
  func.func @transform_12(%arg0: i32) -> (i32, i32) {
    %c0_i32 = arith.constant 0 : i32
    %c0_i32_0 = arith.constant 0 : i32
    return %arg0, %c0_i32 : i32, i32
  }
}

</mosaic_0001>

<llo_original>
// kernel: vae_forward.1
$region0: #{vae_forward.1}
  #allocation0 [shape = 'u32[]', space=smem, size = 0x4, offset = 0x4, fixed_abs, tag = 'smem constant byte address 0x4 - core index']
  #allocation1 [shape = 'u32[144,128]{1,0:T(1,128)}', space=vmem, size = 0x12000, scoped, tag = 'internal scratch']
  %s0 = inlined_call_operand.vmem [shape: f32[8,64], index: 0, kind: input, shape index: {}]
  %s1 = inlined_call_operand.vmem [shape: f32[8,4], index: 1, kind: input, shape index: {}]
  %s2 = inlined_call_operand.vmem [shape: f32[64,128], index: 2, kind: input, shape index: {}]
  %s3 = inlined_call_operand.vmem [shape: f32[1,128], index: 3, kind: input, shape index: {}]
  %s4 = inlined_call_operand.vmem [shape: f32[128,8], index: 4, kind: input, shape index: {}]
  %s5 = inlined_call_operand.vmem [shape: f32[1,8], index: 5, kind: input, shape index: {}]
  %s6 = inlined_call_operand.vmem [shape: f32[4,128], index: 6, kind: input, shape index: {}]
  %s7 = inlined_call_operand.vmem [shape: f32[1,128], index: 7, kind: input, shape index: {}]
  %s8 = inlined_call_operand.vmem [shape: f32[128,64], index: 8, kind: input, shape index: {}]
  %s9 = inlined_call_operand.vmem [shape: f32[1,64], index: 9, kind: input, shape index: {}]
  %s10 = inlined_call_operand.hbm [shape: f32[8,64], index: 10, kind: output, shape index: {0}]
  %s11 = inlined_call_operand.vmem [shape: f32[8,4], index: 11, kind: output, shape index: {1}]
  %s12 = inlined_call_operand.vmem [shape: f32[8,4], index: 12, kind: output, shape index: {2}]
  %13 = xla_tuple %s10, %s11, %s12
  %s14 = sld [smem:[#allocation0]]
  $region66: #{vae_forward.1} parent=0
    _
  %s16 = ssub.s32 1, %s14
  %s17 = scalar_select 0, %s16, %s14
  $region1: #{vae_forward.1} parent=0
    #allocation2 [shape = 'u8[4096]{0}', space=vmem, size = 0x1000, scoped, tag = 'output window, operand 0, single buffered']
    #allocation3 [shape = 's32[1]{0}', space=sflag, size = 0x4, scoped, tag = 'scoped memory for vae_forward.1']
    %18 = vsyncpa [#allocation3], 0
    // Predicated region
    $region2: #{vae_forward.1} parent=1 // pred_check
      _
    $region3: #{vae_forward.1} parent=1 // pred_check_branch
      %20 = sbr.rel (0) target = $region5
    $region4: #{vae_forward.1} parent=1 // pred_region
      _
    $region5: #{vae_forward.1} parent=1 // pred_fallthru
      _
    // Predicated region
    $region6: #{vae_forward.1} parent=1 // pred_check
      _
    $region7: #{vae_forward.1} parent=1 // pred_check_branch
      %22 = sbr.rel (0) target = $region9
    $region8: #{vae_forward.1} parent=1 // pred_region
      _
    $region9: #{vae_forward.1} parent=1 // pred_fallthru
      _
    // Predicated region
    $region10: #{vae_forward.1} parent=1 // pred_check
      _
    $region11: #{vae_forward.1} parent=1 // pred_check_branch
      %24 = sbr.rel (0) target = $region13
    $region12: #{vae_forward.1} parent=1 // pred_region
      _
    $region13: #{vae_forward.1} parent=1 // pred_fallthru
      _
    // Predicated region
    $region14: #{vae_forward.1} parent=1 // pred_check
      _
    $region15: #{vae_forward.1} parent=1 // pred_check_branch
      %26 = sbr.rel (0) target = $region17
    $region16: #{vae_forward.1} parent=1 // pred_region
      _
    $region17: #{vae_forward.1} parent=1 // pred_fallthru
      _
    // Predicated region
    $region18: #{vae_forward.1} parent=1 // pred_check
      _
    $region19: #{vae_forward.1} parent=1 // pred_check_branch
      %28 = sbr.rel (0) target = $region21
    $region20: #{vae_forward.1} parent=1 // pred_region
      _
    $region21: #{vae_forward.1} parent=1 // pred_fallthru
      _
    // Predicated region
    $region22: #{vae_forward.1} parent=1 // pred_check
      _
    $region23: #{vae_forward.1} parent=1 // pred_check_branch
      %30 = sbr.rel (0) target = $region25
    $region24: #{vae_forward.1} parent=1 // pred_region
      _
    $region25: #{vae_forward.1} parent=1 // pred_fallthru
      _
    // Predicated region
    $region26: #{vae_forward.1} parent=1 // pred_check
      _
    $region27: #{vae_forward.1} parent=1 // pred_check_branch
      %32 = sbr.rel (0) target = $region29
    $region28: #{vae_forward.1} parent=1 // pred_region
      _
    $region29: #{vae_forward.1} parent=1 // pred_fallthru
      _
    // Predicated region
    $region30: #{vae_forward.1} parent=1 // pred_check
      _
    $region31: #{vae_forward.1} parent=1 // pred_check_branch
      %34 = sbr.rel (0) target = $region33
    $region32: #{vae_forward.1} parent=1 // pred_region
      _
    $region33: #{vae_forward.1} parent=1 // pred_fallthru
      _
    // Predicated region
    $region34: #{vae_forward.1} parent=1 // pred_check
      _
    $region35: #{vae_forward.1} parent=1 // pred_check_branch
      %36 = sbr.rel (0) target = $region37
    $region36: #{vae_forward.1} parent=1 // pred_region
      _
    $region37: #{vae_forward.1} parent=1 // pred_fallthru
      _
    // Predicated region
    $region38: #{vae_forward.1} parent=1 // pred_check
      _
    $region39: #{vae_forward.1} parent=1 // pred_check_branch
      %38 = sbr.rel (0) target = $region41
    $region40: #{vae_forward.1} parent=1 // pred_region
      _
    $region41: #{vae_forward.1} parent=1 // pred_fallthru
      _
    %v39 = vld [vmem:[%s0] sm:$0xff]
    %v40 = vld [vmem:[%s2] sm:$0xff]
    %v41 = vld [vmem:[%s2 + $0x8] sm:$0xff]
    %v42 = vld [vmem:[%s2 + $0x10] sm:$0xff]
    %v43 = vld [vmem:[%s2 + $0x18] sm:$0xff]
    %v44 = vld [vmem:[%s2 + $0x20] sm:$0xff]
    %v45 = vld [vmem:[%s2 + $0x28] sm:$0xff]
    %v46 = vld [vmem:[%s2 + $0x30] sm:$0xff]
    %v47 = vld [vmem:[%s2 + $0x38] sm:$0xff]
    %v48 = vld [vmem:[%s3] sm:$0x1]
    %v50 = vlaneseq
    %v51 = vshrl.u32 %v50, 7
    %v52 = vsub.s32 0, %v51
    %v53 = vrot.slane %v48, %v52
    %vm55 = vcmask 523264
    %v57 = vsel %vm55, %v39, 0
    %59 = vmatprep.subr.mxu0 0.0
    %60 = vmatpush1.msra.mxu0 0.0
    %61 = vmatprep.subr.mxu0 0.0
    %62 = vmatpush1.msra.mxu0 0.0
    %63 = vmatprep.subr.mxu0 0.0
    %64 = vmatpush1.msra.mxu0 0.0
    %65 = vmatprep.subr.mxu0 0.0
    %66 = vmatpush1.msra.mxu0 0.0
    %67 = vmatprep.subr.mxu0 0.0
    %68 = vmatpush1.msra.mxu0 0.0
    %69 = vmatprep.subr.mxu0 0.0
    %70 = vmatpush1.msra.mxu0 0.0
    %71 = vmatprep.subr.mxu0 0.0
    %72 = vmatpush1.msra.mxu0 0.0
    %73 = vmatprep.subr.mxu0 0.0
    %74 = vmatpush1.msra.mxu0 0.0
    %75 = vmatprep.subr.mxu0 0.0
    %76 = vmatpush1.msra.mxu0 %v47
    %77 = vmatprep.subr.mxu0 0.0
    %78 = vmatpush1.msra.mxu0 %v46
    %79 = vmatprep.subr.mxu0 0.0
    %80 = vmatpush1.msra.mxu0 %v45
    %81 = vmatprep.subr.mxu0 0.0
    %82 = vmatpush1.msra.mxu0 %v44
    %83 = vmatprep.subr.mxu0 0.0
    %84 = vmatpush1.msra.mxu0 %v43
    %85 = vmatprep.subr.mxu0 0.0
    %86 = vmatpush1.msra.mxu0 %v42
    %87 = vmatprep.subr.mxu0 0.0
    %88 = vmatpush1.msra.mxu0 %v41
    %89 = vmatprep.subr.mxu0 0.0
    %90 = vmatpush1.msra.mxu0 %v40
    %91 = vmatprep.subr.mxu0 0.0
    %92 = vmatpush2.msra.mxu0 0.0
    %93 = vmatprep.subr.mxu0 0.0
    %94 = vmatpush2.msra.mxu0 0.0
    %95 = vmatprep.subr.mxu0 0.0
    %96 = vmatpush2.msra.mxu0 0.0
    %97 = vmatprep.subr.mxu0 0.0
    %98 = vmatpush2.msra.mxu0 0.0
    %99 = vmatprep.subr.mxu0 0.0
    %100 = vmatpush2.msra.mxu0 0.0
    %101 = vmatprep.subr.mxu0 0.0
    %102 = vmatpush2.msra.mxu0 0.0
    %103 = vmatprep.subr.mxu0 0.0
    %104 = vmatpush2.msra.mxu0 0.0
    %105 = vmatprep.subr.mxu0 0.0
    %106 = vmatpush2.msra.mxu0 0.0
    %107 = vmatprep.subr.mxu0 0.0
    %108 = vmatpush2.msra.mxu0 0.0
    %109 = vmatprep.subr.mxu0 0.0
    %110 = vmatpush2.msra.mxu0 0.0
    %111 = vmatprep.subr.mxu0 0.0
    %112 = vmatpush2.msra.mxu0 0.0
    %113 = vmatprep.subr.mxu0 0.0
    %114 = vmatpush2.msra.mxu0 0.0
    %115 = vmatprep.subr.mxu0 0.0
    %116 = vmatpush2.msra.mxu0 0.0
    %117 = vmatprep.subr.mxu0 0.0
    %118 = vmatpush2.msra.mxu0 0.0
    %119 = vmatprep.subr.mxu0 0.0
    %120 = vmatpush2.msra.mxu0 0.0
    %121 = vmatprep.subr.mxu0 0.0
    %122 = vmatpush2.msra.mxu0 0.0
    %123 = vmatprep.mubr.f32.mxu0 0.0
    %124 = vmatmul.mubr.f32.gmra.mxu0 %v57
    %v125 = vpop.f32.mrf.mxu0
    %v126 = vadd.f32 %v53, %v125
    %v127 = vpop.f32.mrf.mxu0
    %128 = vdwg.mxu0
    %vm129 = vcmp.gt.f32.partialorder %v126, 0.0
    %v130 = vmul.f32 %v126, 0.2
    %v131 = vsel %vm129, %v126, %v130
    %v132 = vld [vmem:[%s4] sm:$0xff]
    %v133 = vld [vmem:[%s4 + $0x8] sm:$0xff]
    %v134 = vld [vmem:[%s4 + $0x10] sm:$0xff]
    %v135 = vld [vmem:[%s4 + $0x18] sm:$0xff]
    %v136 = vld [vmem:[%s4 + $0x20] sm:$0xff]
    %v137 = vld [vmem:[%s4 + $0x28] sm:$0xff]
    %v138 = vld [vmem:[%s4 + $0x30] sm:$0xff]
    %v139 = vld [vmem:[%s4 + $0x38] sm:$0xff]
    %v140 = vld [vmem:[%s4 + $0x40] sm:$0xff]
    %v141 = vld [vmem:[%s4 + $0x48] sm:$0xff]
    %v142 = vld [vmem:[%s4 + $0x50] sm:$0xff]
    %v143 = vld [vmem:[%s4 + $0x58] sm:$0xff]
    %v144 = vld [vmem:[%s4 + $0x60] sm:$0xff]
    %v145 = vld [vmem:[%s4 + $0x68] sm:$0xff]
    %v146 = vld [vmem:[%s4 + $0x70] sm:$0xff]
    %v147 = vld [vmem:[%s4 + $0x78] sm:$0xff]
    %v148 = vld [vmem:[%s5] sm:$0x1]
    %v150 = vlaneseq
    %v151 = vshrl.u32 %v150, 7
    %v152 = vsub.s32 0, %v151
    %v153 = vrot.slane %v148, %v152
    %155 = vmatprep.subr.mxu0 0.0
    %156 = vmatpush1.msra.mxu0 %v147
    %157 = vmatprep.subr.mxu0 0.0
    %158 = vmatpush1.msra.mxu0 %v146
    %159 = vmatprep.subr.mxu0 0.0
    %160 = vmatpush1.msra.mxu0 %v145
    %161 = vmatprep.subr.mxu0 0.0
    %162 = vmatpush1.msra.mxu0 %v144
    %163 = vmatprep.subr.mxu0 0.0
    %164 = vmatpush1.msra.mxu0 %v143
    %165 = vmatprep.subr.mxu0 0.0
    %166 = vmatpush1.msra.mxu0 %v142
    %167 = vmatprep.subr.mxu0 0.0
    %168 = vmatpush1.msra.mxu0 %v141
    %169 = vmatprep.subr.mxu0 0.0
    %170 = vmatpush1.msra.mxu0 %v140
    %171 = vmatprep.subr.mxu0 0.0
    %172 = vmatpush1.msra.mxu0 %v139
    %173 = vmatprep.subr.mxu0 0.0
    %174 = vmatpush1.msra.mxu0 %v138
    %175 = vmatprep.subr.mxu0 0.0
    %176 = vmatpush1.msra.mxu0 %v137
    %177 = vmatprep.subr.mxu0 0.0
    %178 = vmatpush1.msra.mxu0 %v136
    %179 = vmatprep.subr.mxu0 0.0
    %180 = vmatpush1.msra.mxu0 %v135
    %181 = vmatprep.subr.mxu0 0.0
    %182 = vmatpush1.msra.mxu0 %v134
    %183 = vmatprep.subr.mxu0 0.0
    %184 = vmatpush1.msra.mxu0 %v133
    %185 = vmatprep.subr.mxu0 0.0
    %186 = vmatpush1.msra.mxu0 %v132
    %187 = vmatprep.subr.mxu0 0.0
    %188 = vmatpush2.msra.mxu0 0.0
    %189 = vmatprep.subr.mxu0 0.0
    %190 = vmatpush2.msra.mxu0 0.0
    %191 = vmatprep.subr.mxu0 0.0
    %192 = vmatpush2.msra.mxu0 0.0
    %193 = vmatprep.subr.mxu0 0.0
    %194 = vmatpush2.msra.mxu0 0.0
    %195 = vmatprep.subr.mxu0 0.0
    %196 = vmatpush2.msra.mxu0 0.0
    %197 = vmatprep.subr.mxu0 0.0
    %198 = vmatpush2.msra.mxu0 0.0
    %199 = vmatprep.subr.mxu0 0.0
    %200 = vmatpush2.msra.mxu0 0.0
    %201 = vmatprep.subr.mxu0 0.0
    %202 = vmatpush2.msra.mxu0 0.0
    %203 = vmatprep.subr.mxu0 0.0
    %204 = vmatpush2.msra.mxu0 0.0
    %205 = vmatprep.subr.mxu0 0.0
    %206 = vmatpush2.msra.mxu0 0.0
    %207 = vmatprep.subr.mxu0 0.0
    %208 = vmatpush2.msra.mxu0 0.0
    %209 = vmatprep.subr.mxu0 0.0
    %210 = vmatpush2.msra.mxu0 0.0
    %211 = vmatprep.subr.mxu0 0.0
    %212 = vmatpush2.msra.mxu0 0.0
    %213 = vmatprep.subr.mxu0 0.0
    %214 = vmatpush2.msra.mxu0 0.0
    %215 = vmatprep.subr.mxu0 0.0
    %216 = vmatpush2.msra.mxu0 0.0
    %217 = vmatprep.subr.mxu0 0.0
    %218 = vmatpush2.msra.mxu0 0.0
    %219 = vmatprep.mubr.f32.mxu0 0.0
    %220 = vmatmul.mubr.f32.gmra.mxu0 %v131
    %v221 = vpop.f32.mrf.mxu0
    %v222 = vadd.f32 %v153, %v221
    %v223 = vpop.f32.mrf.mxu0
    %224 = vdwg.mxu0
    %vm225 = vcmask 31744
    %226 = vst.msk [vmem:[%s11] sm:$0xff] %vm225, %v222
    %228 = vrot.lane.b32.xlu0 %v222, 124
    %v229 = vpop.permute.xlu0 %228
    %231 = vst.msk [vmem:[%s12] sm:$0xff] %vm225, %v229
    %v232 = vmul.f32 %v222, 0.5
    %v233 = vmul.f32 %v232, 1.442695
    %v234 = vpow.pop %v233
    %v235 = vld [vmem:[%s1] sm:$0xff]
    %237 = vrot.lane.b32.xlu0 %v235, 4
    %v238 = vpop.permute.xlu0 %237
    %v240 = vmul.f32 %v234, %v238
    %242 = vrot.lane.b32.xlu0 %v240, 124
    %v243 = vpop.permute.xlu0 %242
    %v245 = vadd.f32 %v222, %v243
    %v246 = vld [vmem:[%s6] sm:$0xf]
    %v247 = vld [vmem:[%s7] sm:$0x1]
    %v249 = vlaneseq
    %v250 = vshrl.u32 %v249, 7
    %v251 = vsub.s32 0, %v250
    %v252 = vrot.slane %v247, %v251
    %v255 = vsel %vm225, %v245, 0
    %vm257 = vcmask 1043456
    %v259 = vsel %vm257, %v246, 0
    %261 = vmatprep.subr.mxu0 0.0
    %262 = vmatpush1.msra.mxu0 0.0
    %263 = vmatprep.subr.mxu0 0.0
    %264 = vmatpush1.msra.mxu0 0.0
    %265 = vmatprep.subr.mxu0 0.0
    %266 = vmatpush1.msra.mxu0 0.0
    %267 = vmatprep.subr.mxu0 0.0
    %268 = vmatpush1.msra.mxu0 0.0
    %269 = vmatprep.subr.mxu0 0.0
    %270 = vmatpush1.msra.mxu0 0.0
    %271 = vmatprep.subr.mxu0 0.0
    %272 = vmatpush1.msra.mxu0 0.0
    %273 = vmatprep.subr.mxu0 0.0
    %274 = vmatpush1.msra.mxu0 0.0
    %275 = vmatprep.subr.mxu0 0.0
    %276 = vmatpush1.msra.mxu0 0.0
    %277 = vmatprep.subr.mxu0 0.0
    %278 = vmatpush1.msra.mxu0 0.0
    %279 = vmatprep.subr.mxu0 0.0
    %280 = vmatpush1.msra.mxu0 0.0
    %281 = vmatprep.subr.mxu0 0.0
    %282 = vmatpush1.msra.mxu0 0.0
    %283 = vmatprep.subr.mxu0 0.0
    %284 = vmatpush1.msra.mxu0 0.0
    %285 = vmatprep.subr.mxu0 0.0
    %286 = vmatpush1.msra.mxu0 0.0
    %287 = vmatprep.subr.mxu0 0.0
    %288 = vmatpush1.msra.mxu0 0.0
    %289 = vmatprep.subr.mxu0 0.0
    %290 = vmatpush1.msra.mxu0 0.0
    %291 = vmatprep.subr.mxu0 0.0
    %292 = vmatpush1.msra.mxu0 %v259
    %293 = vmatprep.subr.mxu0 0.0
    %294 = vmatpush2.msra.mxu0 0.0
    %295 = vmatprep.subr.mxu0 0.0
    %296 = vmatpush2.msra.mxu0 0.0
    %297 = vmatprep.subr.mxu0 0.0
    %298 = vmatpush2.msra.mxu0 0.0
    %299 = vmatprep.subr.mxu0 0.0
    %300 = vmatpush2.msra.mxu0 0.0
    %301 = vmatprep.subr.mxu0 0.0
    %302 = vmatpush2.msra.mxu0 0.0
    %303 = vmatprep.subr.mxu0 0.0
    %304 = vmatpush2.msra.mxu0 0.0
    %305 = vmatprep.subr.mxu0 0.0
    %306 = vmatpush2.msra.mxu0 0.0
    %307 = vmatprep.subr.mxu0 0.0
    %308 = vmatpush2.msra.mxu0 0.0
    %309 = vmatprep.subr.mxu0 0.0
    %310 = vmatpush2.msra.mxu0 0.0
    %311 = vmatprep.subr.mxu0 0.0
    %312 = vmatpush2.msra.mxu0 0.0
    %313 = vmatprep.subr.mxu0 0.0
    %314 = vmatpush2.msra.mxu0 0.0
    %315 = vmatprep.subr.mxu0 0.0
    %316 = vmatpush2.msra.mxu0 0.0
    %317 = vmatprep.subr.mxu0 0.0
    %318 = vmatpush2.msra.mxu0 0.0
    %319 = vmatprep.subr.mxu0 0.0
    %320 = vmatpush2.msra.mxu0 0.0
    %321 = vmatprep.subr.mxu0 0.0
    %322 = vmatpush2.msra.mxu0 0.0
    %323 = vmatprep.subr.mxu0 0.0
    %324 = vmatpush2.msra.mxu0 0.0
    %325 = vmatprep.mubr.f32.mxu0 0.0
    %326 = vmatmul.mubr.f32.gmra.mxu0 %v255
    %v327 = vpop.f32.mrf.mxu0
    %v328 = vadd.f32 %v252, %v327
    %v329 = vpop.f32.mrf.mxu0
    %330 = vdwg.mxu0
    %v331 = vmax.f32 %v328, 0.0
    %v332 = vld [vmem:[%s8] sm:$0xff]
    %v333 = vld [vmem:[%s8 + $0x8] sm:$0xff]
    %v334 = vld [vmem:[%s8 + $0x10] sm:$0xff]
    %v335 = vld [vmem:[%s8 + $0x18] sm:$0xff]
    %v336 = vld [vmem:[%s8 + $0x20] sm:$0xff]
    %v337 = vld [vmem:[%s8 + $0x28] sm:$0xff]
    %v338 = vld [vmem:[%s8 + $0x30] sm:$0xff]
    %v339 = vld [vmem:[%s8 + $0x38] sm:$0xff]
    %v340 = vld [vmem:[%s8 + $0x40] sm:$0xff]
    %v341 = vld [vmem:[%s8 + $0x48] sm:$0xff]
    %v342 = vld [vmem:[%s8 + $0x50] sm:$0xff]
    %v343 = vld [vmem:[%s8 + $0x58] sm:$0xff]
    %v344 = vld [vmem:[%s8 + $0x60] sm:$0xff]
    %v345 = vld [vmem:[%s8 + $0x68] sm:$0xff]
    %v346 = vld [vmem:[%s8 + $0x70] sm:$0xff]
    %v347 = vld [vmem:[%s8 + $0x78] sm:$0xff]
    %v348 = vld [vmem:[%s9] sm:$0x1]
    %v350 = vlaneseq
    %v351 = vshrl.u32 %v350, 7
    %v352 = vsub.s32 0, %v351
    %v353 = vrot.slane %v348, %v352
    %355 = vmatprep.subr.mxu0 0.0
    %356 = vmatpush1.msra.mxu0 %v347
    %357 = vmatprep.subr.mxu0 0.0
    %358 = vmatpush1.msra.mxu0 %v346
    %359 = vmatprep.subr.mxu0 0.0
    %360 = vmatpush1.msra.mxu0 %v345
    %361 = vmatprep.subr.mxu0 0.0
    %362 = vmatpush1.msra.mxu0 %v344
    %363 = vmatprep.subr.mxu0 0.0
    %364 = vmatpush1.msra.mxu0 %v343
    %365 = vmatprep.subr.mxu0 0.0
    %366 = vmatpush1.msra.mxu0 %v342
    %367 = vmatprep.subr.mxu0 0.0
    %368 = vmatpush1.msra.mxu0 %v341
    %369 = vmatprep.subr.mxu0 0.0
    %370 = vmatpush1.msra.mxu0 %v340
    %371 = vmatprep.subr.mxu0 0.0
    %372 = vmatpush1.msra.mxu0 %v339
    %373 = vmatprep.subr.mxu0 0.0
    %374 = vmatpush1.msra.mxu0 %v338
    %375 = vmatprep.subr.mxu0 0.0
    %376 = vmatpush1.msra.mxu0 %v337
    %377 = vmatprep.subr.mxu0 0.0
    %378 = vmatpush1.msra.mxu0 %v336
    %379 = vmatprep.subr.mxu0 0.0
    %380 = vmatpush1.msra.mxu0 %v335
    %381 = vmatprep.subr.mxu0 0.0
    %382 = vmatpush1.msra.mxu0 %v334
    %383 = vmatprep.subr.mxu0 0.0
    %384 = vmatpush1.msra.mxu0 %v333
    %385 = vmatprep.subr.mxu0 0.0
    %386 = vmatpush1.msra.mxu0 %v332
    %387 = vmatprep.subr.mxu0 0.0
    %388 = vmatpush2.msra.mxu0 0.0
    %389 = vmatprep.subr.mxu0 0.0
    %390 = vmatpush2.msra.mxu0 0.0
    %391 = vmatprep.subr.mxu0 0.0
    %392 = vmatpush2.msra.mxu0 0.0
    %393 = vmatprep.subr.mxu0 0.0
    %394 = vmatpush2.msra.mxu0 0.0
    %395 = vmatprep.subr.mxu0 0.0
    %396 = vmatpush2.msra.mxu0 0.0
    %397 = vmatprep.subr.mxu0 0.0
    %398 = vmatpush2.msra.mxu0 0.0
    %399 = vmatprep.subr.mxu0 0.0
    %400 = vmatpush2.msra.mxu0 0.0
    %401 = vmatprep.subr.mxu0 0.0
    %402 = vmatpush2.msra.mxu0 0.0
    %403 = vmatprep.subr.mxu0 0.0
    %404 = vmatpush2.msra.mxu0 0.0
    %405 = vmatprep.subr.mxu0 0.0
    %406 = vmatpush2.msra.mxu0 0.0
    %407 = vmatprep.subr.mxu0 0.0
    %408 = vmatpush2.msra.mxu0 0.0
    %409 = vmatprep.subr.mxu0 0.0
    %410 = vmatpush2.msra.mxu0 0.0
    %411 = vmatprep.subr.mxu0 0.0
    %412 = vmatpush2.msra.mxu0 0.0
    %413 = vmatprep.subr.mxu0 0.0
    %414 = vmatpush2.msra.mxu0 0.0
    %415 = vmatprep.subr.mxu0 0.0
    %416 = vmatpush2.msra.mxu0 0.0
    %417 = vmatprep.subr.mxu0 0.0
    %418 = vmatpush2.msra.mxu0 0.0
    %419 = vmatprep.mubr.f32.mxu0 0.0
    %420 = vmatmul.mubr.f32.gmra.mxu0 %v331
    %v421 = vpop.f32.mrf.mxu0
    %v422 = vadd.f32 %v353, %v421
    %v423 = vpop.f32.mrf.mxu0
    %424 = vdwg.mxu0
    %v425 = vxor.u32 %v422, 2147483648
    %v426 = vmul.f32 %v425, 1.442695
    %v427 = vpow.pop %v426
    %v428 = vadd.f32 %v427, 1.0
    %v429 = vrcp.pop %v428
    %v430 = vmul.f32 1.0, %v429
    %431 = vst.msk [vmem:[#allocation2] sm:$0xff] %vm55, %v430
    // Predicated region
    $region42: #{vae_forward.1} parent=1 // pred_check
      _
    $region43: #{vae_forward.1} parent=1 // pred_check_branch
      %433 = sbr.rel (0) target = $region45
    $region44: #{vae_forward.1} parent=1 // pred_region
      %s435 = ssub.s32 128, 128
      %436 = vsyncadd [#allocation3], %s435
      %s438 = sshll.u32 [#allocation2], 4
      %s439 = int_to_ptr.vmem [resolvable:$true] %s438
      %441 = dma.vmem_to_hbm [thread:$0]  %s439, 128, %s10, [#allocation3]
    $region45: #{vae_forward.1} parent=1 // pred_fallthru
      _
    // Predicated region
    $region46: #{vae_forward.1} parent=1 // pred_check
      _
    $region47: #{vae_forward.1} parent=1 // pred_check_branch
      %443 = sbr.rel (0) target = $region49
    $region48: #{vae_forward.1} parent=1 // pred_region
      _
    $region49: #{vae_forward.1} parent=1 // pred_fallthru
      _
    // Predicated region
    $region50: #{vae_forward.1} parent=1 // pred_check
      _
    $region51: #{vae_forward.1} parent=1 // pred_check_branch
      %445 = sbr.rel (0) target = $region53
    $region52: #{vae_forward.1} parent=1 // pred_region
      _
    $region53: #{vae_forward.1} parent=1 // pred_fallthru
      _
    // Predicated region
    $region54: #{vae_forward.1} parent=1 // pred_check
      _
    $region55: #{vae_forward.1} parent=1 // pred_check_branch
      %447 = sbr.rel (0) target = $region57
    $region56: #{vae_forward.1} parent=1 // pred_region
      %448 = dma.done [#allocation3], 128
    $region57: #{vae_forward.1} parent=1 // pred_fallthru
      _
    // Predicated region
    $region58: #{vae_forward.1} parent=1 // pred_check
      _
    $region59: #{vae_forward.1} parent=1 // pred_check_branch
      %450 = sbr.rel (0) target = $region61
    $region60: #{vae_forward.1} parent=1 // pred_region
      _
    $region61: #{vae_forward.1} parent=1 // pred_fallthru
      _
    // Predicated region
    $region62: #{vae_forward.1} parent=1 // pred_check
      _
    $region63: #{vae_forward.1} parent=1 // pred_check_branch
      %452 = sbr.rel (0) target = $region65
    $region64: #{vae_forward.1} parent=1 // pred_region
      _
    $region65: #{vae_forward.1} parent=1 // pred_fallthru
      _
    %453 = vsyncpa [#allocation3], 1

</llo_original>
